<compile_context>
chip_gen: v7x
topology: tpu7x:2x2x1
jax: 0.10.0
libtpu: 0.0.40
codegen_flags: <defaults>
</compile_context>

<pallas_src>
import functools

import jax
import jax.numpy as jnp
import numpy as np
from jax.experimental import pallas as pl
from jax.experimental.pallas import tpu as pltpu

KERNEL_SIZE = 7
SIGMA = 25.0
NUM_ANGLES = 360

# Compile-time constant: sum of the 15 filter taps exp(-|d|/sigma).
TAP_SUM = float(np.sum(np.exp(-np.abs(np.arange(-KERNEL_SIZE, KERNEL_SIZE + 1,
                                                dtype=np.float64)) / SIGMA)))


def make_viewloss_filter(size=KERNEL_SIZE, sigma=SIGMA):
    """Deterministic filter init (mirrors SoftmaxVPLoss.viewloss_filter)."""
    vec = np.linspace(-1 * size, size, 1 + 2 * size, dtype=np.float64)
    prob = np.exp(-1 * np.abs(vec) / sigma)
    return jnp.asarray(prob, dtype=jnp.float32)  # shape (2*size+1,)


def _round_up(x, m):
    return ((x + m - 1) // m) * m


def _vp_loss_kernel(labels_ref, preds_ref, out_ref, acc_ref, *,
                    batch, size_average, kernel_size, sigma, tap_sum):
    # labels_ref: VMEM (TB, 1)  int32
    # preds_ref:  VMEM (TB, N)  float (cast to f32 after load)
    # out_ref:    SMEM (1, 1)   float32
    # acc_ref:    SMEM (1, 1)   float32 scratch (persists across grid steps)
    i = pl.program_id(0)

    @pl.when(i == 0)
    def _init():
        acc_ref[0, 0] = jnp.float32(0.0)

    preds = preds_ref[...].astype(jnp.float32)          # (TB, N)
    lab = labels_ref[...]                               # (TB, 1) int32
    tb, n = preds.shape

    # Circular distance of each angle bin to the label (no per-tap modulo).
    col = jax.lax.broadcasted_iota(jnp.int32, (tb, n), 1)
    delta = col - lab
    delta = jnp.where(delta < 0, delta + n, delta)      # now in [0, N)
    dist = jnp.minimum(delta, n - delta)                # circular distance

    # Smoothed target = exp(-dist/sigma) inside the +/- kernel_size window.
    smoothed = jnp.where(dist <= kernel_size,
                         jnp.exp(-dist.astype(jnp.float32) / sigma),
                         0.0)

    # loss_b = W * logsumexp(preds_b) - <smoothed_b, preds_b>
    # (algebraic form of sum_j -smoothed * log_softmax(preds), since the
    #  row sum of `smoothed` is exactly the constant tap sum W).
    m = jnp.max(preds, axis=1, keepdims=True)
    lse = m + jnp.log(jnp.sum(jnp.exp(preds - m), axis=1, keepdims=True))
    wsum = jnp.sum(smoothed * preds, axis=1, keepdims=True)
    per_row = tap_sum * lse - wsum                      # (TB, 1)

    # Mask out padded rows beyond the true batch size.
    row = i * tb + jax.lax.broadcasted_iota(jnp.int32, (tb, 1), 0)
    per_row = jnp.where(row < batch, per_row, 0.0)

    acc_ref[0, 0] += jnp.sum(per_row)

    @pl.when(i == pl.num_programs(0) - 1)
    def _finalize():
        total = acc_ref[0, 0]
        if size_average:
            total = total / batch
        out_ref[0, 0] = total


def softmax_vp_loss(preds, labels, size_average=True, tile_rows=512):
    """preds: (B, 360) float, labels: (B,) integer angles in [0, 360)."""
    B, N = preds.shape
    assert N == NUM_ANGLES
    assert labels.ndim == 1 and labels.shape[0] == B
    labels_2d = labels.astype(jnp.int32).reshape(B, 1)

    # Batch tile: multiple of 8 sublanes, capped so double-buffered tiles stay
    # small even under v5e's 16 MiB / v7x's 32 MiB scoped-VMEM defaults.
    tb = min(tile_rows, _round_up(B, 8))
    padded_b = _round_up(B, tb)
    if padded_b != B:
        preds = jnp.pad(preds, ((0, padded_b - B), (0, 0)))
        labels_2d = jnp.pad(labels_2d, ((0, padded_b - B), (0, 0)))
    grid = (padded_b // tb,)

    kernel = functools.partial(
        _vp_loss_kernel,
        batch=B,
        size_average=size_average,
        kernel_size=KERNEL_SIZE,
        sigma=SIGMA,
        tap_sum=TAP_SUM,
    )
    out = pl.pallas_call(
        kernel,
        out_shape=jax.ShapeDtypeStruct((1, 1), jnp.float32),
        grid_spec=pltpu.PrefetchScalarGridSpec(
            num_scalar_prefetch=0,
            grid=grid,
            in_specs=[
                pl.BlockSpec((tb, 1), lambda i: (i, 0)),   # labels tile
                pl.BlockSpec((tb, N), lambda i: (i, 0)),   # preds tile
            ],
            out_specs=pl.BlockSpec((1, 1), lambda i: (0, 0),
                                   memory_space=pltpu.MemorySpace.SMEM),
            scratch_shapes=[pltpu.SMEM((1, 1), jnp.float32)],
        ),
        compiler_params=pltpu.CompilerParams(
            dimension_semantics=("arbitrary",),
            vmem_limit_bytes=64 << 20,
        ),
    )(labels_2d, preds)
    return out[0, 0]


def _reference_loss(preds, labels, filt, size_average=True):
    """Plain-JAX transcription of the PyTorch forward, for verification."""
    B, N = preds.shape
    oh = jax.nn.one_hot(labels, N, dtype=jnp.float32)
    pad = jnp.concatenate([oh[:, -KERNEL_SIZE:], oh, oh[:, :KERNEL_SIZE]], axis=1)
    sm = jax.lax.conv_general_dilated(
        pad[:, None, :], filt[None, None, :], (1,), "VALID",
        dimension_numbers=("NCH", "OIH", "NCH"))[:, 0, :]
    logp = jax.nn.log_softmax(preds, axis=1)
    loss = jnp.sum(-sm * logp, axis=1)
    return loss.mean() if size_average else loss.sum()


if __name__ == "__main__":
    key = jax.random.PRNGKey(0)
    k_preds, k_labels = jax.random.split(key)

    B = 8
    preds = jax.random.normal(k_preds, (B, NUM_ANGLES), dtype=jnp.float32)
    labels = jax.random.randint(k_labels, (B,), 0, NUM_ANGLES, dtype=jnp.int32)
    filt = make_viewloss_filter()

    loss_mean = jax.block_until_ready(softmax_vp_loss(preds, labels, True))
    loss_sum = jax.block_until_ready(softmax_vp_loss(preds, labels, False))

    ref_mean = _reference_loss(preds, labels, filt, True)
    ref_sum = _reference_loss(preds, labels, filt, False)

    assert np.allclose(np.asarray(loss_mean), np.asarray(ref_mean),
                       rtol=1e-5, atol=1e-4), (float(loss_mean), float(ref_mean))
    assert np.allclose(np.asarray(loss_sum), np.asarray(ref_sum),
                       rtol=1e-5, atol=1e-3), (float(loss_sum), float(ref_sum))

    print("KERNEL_OK")
</pallas_src>

<mosaic_0001>
module attributes {stable_mosaic.version = 11 : i64} {
  func.func @_vp_loss_kernel(%arg0: i32, %arg1: memref<8x1xi32, #tpu.memory_space<vmem>>, %arg2: memref<8x360xf32, #tpu.memory_space<vmem>>, %arg3: memref<1x1xf32, #tpu.memory_space<smem>>, %arg4: memref<1x1xf32, #tpu.memory_space<smem>>) attributes {dimension_semantics = [#tpu.dimension_semantics<arbitrary>], iteration_bounds = array<i64: 1>, scalar_prefetch = 0 : i64, scratch_operands = 1 : i64, tpu.core_type = #tpu.core_type<tc>, window_params = [{transform_indices = @transform_0, window_bounds = array<i64: 8, 1>}, {transform_indices = @transform_1, window_bounds = array<i64: 8, 360>}, {transform_indices = @transform_2, window_bounds = array<i64: 1, 1>}]} {
    %c0_i32 = arith.constant 0 : i32
    %0 = arith.cmpi eq, %arg0, %c0_i32 : i32
    %1 = arith.extui %0 : i1 to i32
    %c0_i32_0 = arith.constant 0 : i32
    %2 = arith.cmpi ne, %1, %c0_i32_0 : i32
    scf.if %2 {
      %cst_21 = arith.constant 0.000000e+00 : f32
      %c0_22 = arith.constant 0 : index
      %c0_23 = arith.constant 0 : index
      %59 = memref.load %arg4[%c0_22, %c0_23] : memref<1x1xf32, #tpu.memory_space<smem>>
      memref.store %cst_21, %arg4[%c0_22, %c0_23] : memref<1x1xf32, #tpu.memory_space<smem>>
    } else {
    }
    %c0 = arith.constant 0 : index
    %c0_1 = arith.constant 0 : index
    %3 = vector.load %arg2[%c0, %c0_1] : memref<8x360xf32, #tpu.memory_space<vmem>>, vector<8x360xf32>
    %c0_2 = arith.constant 0 : index
    %c0_3 = arith.constant 0 : index
    %4 = vector.load %arg1[%c0_2, %c0_3] : memref<8x1xi32, #tpu.memory_space<vmem>>, vector<8x1xi32>
    %5 = tpu.iota {dimensions = array<i32: 1>} : vector<8x360xi32>
    %6 = vector.broadcast %4 : vector<8x1xi32> to vector<8x360xi32>
    %7 = arith.subi %5, %6 : vector<8x360xi32>
    %c0_i32_4 = arith.constant 0 : i32
    %8 = vector.broadcast %c0_i32_4 : i32 to vector<8x360xi32>
    %9 = arith.cmpi slt, %7, %8 : vector<8x360xi32>
    %c360_i32 = arith.constant 360 : i32
    %10 = vector.broadcast %c360_i32 : i32 to vector<8x360xi32>
    %11 = arith.addi %7, %10 : vector<8x360xi32>
    %12 = arith.select %9, %11, %7 : vector<8x360xi1>, vector<8x360xi32>
    %c360_i32_5 = arith.constant 360 : i32
    %13 = vector.broadcast %c360_i32_5 : i32 to vector<8x360xi32>
    %14 = arith.subi %13, %12 : vector<8x360xi32>
    %15 = arith.minsi %12, %14 : vector<8x360xi32>
    %c7_i32 = arith.constant 7 : i32
    %16 = vector.broadcast %c7_i32 : i32 to vector<8x360xi32>
    %17 = arith.cmpi sle, %15, %16 : vector<8x360xi32>
    %18 = arith.sitofp %15 : vector<8x360xi32> to vector<8x360xf32>
    %cst = arith.constant 0.000000e+00 : f32
    %19 = vector.broadcast %cst : f32 to vector<8x360xf32>
    %20 = arith.subf %19, %18 : vector<8x360xf32>
    %cst_6 = arith.constant 2.500000e+01 : f32
    %21 = vector.broadcast %cst_6 : f32 to vector<8x360xf32>
    %22 = arith.divf %20, %21 : vector<8x360xf32>
    %23 = math.exp %22 : vector<8x360xf32>
    %cst_7 = arith.constant 0.000000e+00 : f32
    %24 = vector.broadcast %cst_7 : f32 to vector<8x360xf32>
    %25 = arith.select %17, %23, %24 : vector<8x360xi1>, vector<8x360xf32>
    %cst_8 = arith.constant dense<0xFF800000> : vector<8xf32>
    %26 = vector.multi_reduction <maximumf>, %3, %cst_8 [1] : vector<8x360xf32> to vector<8xf32>
    %27 = vector.shape_cast %26 : vector<8xf32> to vector<8x1xf32>
    %28 = vector.broadcast %27 : vector<8x1xf32> to vector<8x360xf32>
    %29 = arith.subf %3, %28 : vector<8x360xf32>
    %30 = math.exp %29 : vector<8x360xf32>
    %cst_9 = arith.constant dense<0.000000e+00> : vector<8xf32>
    %31 = vector.multi_reduction <add>, %30, %cst_9 [1] : vector<8x360xf32> to vector<8xf32>
    %32 = vector.shape_cast %31 : vector<8xf32> to vector<8x1xf32>
    %33 = math.log %32 : vector<8x1xf32>
    %34 = arith.addf %27, %33 : vector<8x1xf32>
    %35 = arith.mulf %25, %3 : vector<8x360xf32>
    %cst_10 = arith.constant dense<0.000000e+00> : vector<8xf32>
    %36 = vector.multi_reduction <add>, %35, %cst_10 [1] : vector<8x360xf32> to vector<8xf32>
    %37 = vector.shape_cast %36 : vector<8xf32> to vector<8x1xf32>
    %cst_11 = arith.constant 12.9682245 : f32
    %38 = vector.broadcast %cst_11 : f32 to vector<8x1xf32>
    %39 = arith.mulf %38, %34 : vector<8x1xf32>
    %40 = arith.subf %39, %37 : vector<8x1xf32>
    %c8_i32 = arith.constant 8 : i32
    %41 = arith.muli %arg0, %c8_i32 : i32
    %42 = tpu.iota {dimensions = array<i32: 0>} : vector<8x1xi32>
    %43 = vector.broadcast %41 : i32 to vector<8x1xi32>
    %44 = arith.addi %43, %42 : vector<8x1xi32>
    %c8_i32_12 = arith.constant 8 : i32
    %45 = vector.broadcast %c8_i32_12 : i32 to vector<8x1xi32>
    %46 = arith.cmpi slt, %44, %45 : vector<8x1xi32>
    %cst_13 = arith.constant 0.000000e+00 : f32
    %47 = vector.broadcast %cst_13 : f32 to vector<8x1xf32>
    %48 = arith.select %46, %40, %47 : vector<8x1xi1>, vector<8x1xf32>
    %c0_14 = arith.constant 0 : index
    %c0_15 = arith.constant 0 : index
    %49 = memref.load %arg4[%c0_14, %c0_15] : memref<1x1xf32, #tpu.memory_space<smem>>
    %50 = vector.shape_cast %48 : vector<8x1xf32> to vector<1x8x1xf32>
    %cst_16 = arith.constant dense<0.000000e+00> : vector<1xf32>
    %51 = vector.multi_reduction <add>, %50, %cst_16 [1, 2] : vector<1x8x1xf32> to vector<1xf32>
    %52 = vector.shape_cast %51 : vector<1xf32> to vector<1x1x1xf32>
    %53 = vector.extract %52[0, 0, 0] : f32 from vector<1x1x1xf32>
    %54 = arith.addf %49, %53 : f32
    %c0_17 = arith.constant 0 : index
    %c0_18 = arith.constant 0 : index
    %55 = memref.load %arg4[%c0_17, %c0_18] : memref<1x1xf32, #tpu.memory_space<smem>>
    memref.store %54, %arg4[%c0_17, %c0_18] : memref<1x1xf32, #tpu.memory_space<smem>>
    %c0_i32_19 = arith.constant 0 : i32
    %56 = arith.cmpi eq, %arg0, %c0_i32_19 : i32
    %57 = arith.extui %56 : i1 to i32
    %c0_i32_20 = arith.constant 0 : i32
    %58 = arith.cmpi ne, %57, %c0_i32_20 : i32
    scf.if %58 {
      %c0_21 = arith.constant 0 : index
      %c0_22 = arith.constant 0 : index
      %59 = memref.load %arg4[%c0_21, %c0_22] : memref<1x1xf32, #tpu.memory_space<smem>>
      %cst_23 = arith.constant 8.000000e+00 : f32
      %60 = arith.divf %59, %cst_23 : f32
      %c0_24 = arith.constant 0 : index
      %c0_25 = arith.constant 0 : index
      %61 = memref.load %arg3[%c0_24, %c0_25] : memref<1x1xf32, #tpu.memory_space<smem>>
      memref.store %60, %arg3[%c0_24, %c0_25] : memref<1x1xf32, #tpu.memory_space<smem>>
    } else {
    }
    return
  }
  func.func @transform_0(%arg0: i32) -> (i32, i32) {
    %c0_i32 = arith.constant 0 : i32
    %c0_i32_0 = arith.constant 0 : i32
    return %arg0, %c0_i32 : i32, i32
  }
  func.func @transform_1(%arg0: i32) -> (i32, i32) {
    %c0_i32 = arith.constant 0 : i32
    %c0_i32_0 = arith.constant 0 : i32
    return %arg0, %c0_i32 : i32, i32
  }
  func.func @transform_2(%arg0: i32) -> (i32, i32) {
    %c0_i32 = arith.constant 0 : i32
    %c0_i32_0 = arith.constant 0 : i32
    %c0_i32_1 = arith.constant 0 : i32
    return %c0_i32, %c0_i32_0 : i32, i32
  }
}

</mosaic_0001>

<llo_original>
// kernel: tpu_custom_call.1
$region0: #{tpu_custom_call.1}
  #allocation0 [shape = 'u32[]', space=smem, size = 0x4, offset = 0x4, fixed_abs, tag = 'smem constant byte address 0x4 - core index']
  #allocation1 [shape = 'u32[144,128]{1,0:T(1,128)}', space=vmem, size = 0x12000, scoped, tag = 'internal scratch']
  #allocation2 [shape = 'f32[1,1]{1,0:T(1,128)}', space=smem, size = 0x200, scoped, tag = 'scratch operand']
  %s0 = inlined_call_operand.hbm [shape: s32[8,1], index: 0, kind: input, shape index: {}]
  %s1 = inlined_call_operand.hbm [shape: f32[8,360], index: 1, kind: input, shape index: {}]
  %s2 = inlined_call_operand.hbm [shape: f32[1,1], index: 2, kind: output, shape index: {}]
  %s3 = sld [smem:[#allocation0]]
  $region34: #{tpu_custom_call.1} parent=0
    _
  %s5 = ssub.s32 1, %s3
  %s6 = scalar_select 0, %s5, %s3
  $region1: #{tpu_custom_call.1} parent=0
    #allocation3 [shape = 'u8[4096]{0}', space=vmem, size = 0x1000, scoped, tag = 'input window, operand 0, single buffered']
    #allocation4 [shape = 's32[1]{0}', space=sflag, size = 0x4, scoped, tag = 'scoped memory for tpu_custom_call.1']
    #allocation5 [shape = 's32[1]{0}', space=sflag, size = 0x4, scoped, tag = 'scoped memory for tpu_custom_call.1']
    #allocation6 [shape = 'u8[12288]{0}', space=vmem, size = 0x3000, scoped, tag = 'input window, operand 1, single buffered']
    #allocation7 [shape = 's32[1]{0}', space=sflag, size = 0x4, scoped, tag = 'scoped memory for tpu_custom_call.1']
    #allocation8 [shape = 'u8[512]{0}', space=smem, size = 0x200, scoped, tag = 'output window, operand 0, single buffered']
    %7 = vsyncpa [#allocation4], 0
    %8 = vsyncpa [#allocation7], 0
    %9 = vsyncpa [#allocation5], 0
    // Predicated region
    $region2: #{tpu_custom_call.1} parent=1 // pred_check
      _
    $region3: #{tpu_custom_call.1} parent=1 // pred_check_branch
      %11 = sbr.rel (0) target = $region5
    $region4: #{tpu_custom_call.1} parent=1 // pred_region
      %s13 = ssub.s32 128, 128
      %14 = vsyncadd [#allocation4], %s13
      %s16 = sshll.u32 [#allocation3], 4
      %s17 = int_to_ptr.vmem [resolvable:$true] %s16
      %19 = dma.hbm_to_vmem [thread:$0]  %s0, 128, %s17, [#allocation4]
    $region5: #{tpu_custom_call.1} parent=1 // pred_fallthru
      _
    // Predicated region
    $region6: #{tpu_custom_call.1} parent=1 // pred_check
      _
    $region7: #{tpu_custom_call.1} parent=1 // pred_check_branch
      %21 = sbr.rel (0) target = $region9
    $region8: #{tpu_custom_call.1} parent=1 // pred_region
      %s23 = ssub.s32 384, 384
      %24 = vsyncadd [#allocation7], %s23
      %s26 = sshll.u32 [#allocation6], 4
      %s27 = int_to_ptr.vmem [resolvable:$true] %s26
      %29 = dma.hbm_to_vmem [thread:$0]  %s1, 384, %s27, [#allocation7]
    $region9: #{tpu_custom_call.1} parent=1 // pred_fallthru
      _
    // Predicated region
    $region10: #{tpu_custom_call.1} parent=1 // pred_check
      _
    $region11: #{tpu_custom_call.1} parent=1 // pred_check_branch
      %31 = sbr.rel (0) target = $region13
    $region12: #{tpu_custom_call.1} parent=1 // pred_region
      %32 = dma.done [#allocation4], 128
    $region13: #{tpu_custom_call.1} parent=1 // pred_fallthru
      _
    // Predicated region
    $region14: #{tpu_custom_call.1} parent=1 // pred_check
      _
    $region15: #{tpu_custom_call.1} parent=1 // pred_check_branch
      %34 = sbr.rel (0) target = $region17
    $region16: #{tpu_custom_call.1} parent=1 // pred_region
      %35 = dma.done [#allocation7], 384
    $region17: #{tpu_custom_call.1} parent=1 // pred_fallthru
      _
    %p36 = scmp.eq.s32.totalorder 0, 0
    // Predicated region
    $region18: #{tpu_custom_call.1} parent=1 // pred_check
      %p37 = pneg %p36
    $region19: #{tpu_custom_call.1} parent=1 // pred_check_branch
      %39 = sbr.rel (%p37) target = $region21
    $region20: #{tpu_custom_call.1} parent=1 // pred_region
      %s40 = scalar_lea.smem [#allocation2], 0
      %41 = sst [smem:[%s40]] 0.0
    $region21: #{tpu_custom_call.1} parent=1 // pred_fallthru
      _
    %v42 = vld [vmem:[#allocation6] sm:$0xff]
    %v43 = vld [vmem:[#allocation6 + $0x8] sm:$0xff]
    %v44 = vld [vmem:[#allocation6 + $0x10] sm:$0xff]
    %v45 = vld [vmem:[#allocation3] sm:$0xff]
    %v46 = vlaneseq
    %v47 = vand.u32 %v46, 127
    %v48 = vadd.s32 %v47, 128
    %v49 = vadd.s32 %v47, 256
    %50 = vset.pattern.permute.xlu0 0
    %51 = vperm.xlu0 %50, %v45
    %v52 = vpop.permute.xlu0 %51
    %v53 = vsub.s32 %v47, %v52
    %v54 = vsub.s32 %v48, %v52
    %v55 = vsub.s32 %v49, %v52
    %vm56 = vcmp.lt.s32.totalorder %v53, 0
    %vm57 = vcmp.lt.s32.totalorder %v54, 0
    %vm58 = vcmp.lt.s32.totalorder %v55, 0
    %v59 = vadd.s32 %v53, 360
    %v60 = vadd.s32 %v54, 360
    %v61 = vadd.s32 %v55, 360
    %v62 = vsel %vm56, %v59, %v53
    %v63 = vsel %vm57, %v60, %v54
    %v64 = vsel %vm58, %v61, %v55
    %v65 = vsub.s32 360, %v62
    %v66 = vsub.s32 360, %v63
    %v67 = vsub.s32 360, %v64
    %vm68 = vcmp.lt.s32.totalorder %v62, %v65
    %v69 = vsel %vm68, %v62, %v65
    %vm70 = vcmp.lt.s32.totalorder %v63, %v66
    %v71 = vsel %vm70, %v63, %v66
    %vm72 = vcmp.lt.s32.totalorder %v64, %v67
    %v73 = vsel %vm72, %v64, %v67
    %vm74 = vcmp.le.s32.totalorder %v69, 7
    %vm75 = vcmp.le.s32.totalorder %v71, 7
    %vm76 = vcmp.le.s32.totalorder %v73, 7
    %v77 = vcvt.s32.f32 %v69
    %v78 = vcvt.s32.f32 %v71
    %v79 = vcvt.s32.f32 %v73
    %v80 = vsub.f32 0.0, %v77
    %v81 = vsub.f32 0.0, %v78
    %v82 = vsub.f32 0.0, %v79
    %v83 = vrcp.pop 25.0
    %v84 = vmul.f32 %v80, %v83
    %v85 = vmul.f32 %v81, %v83
    %v86 = vmul.f32 %v82, %v83
    %v87 = vmul.f32 %v84, 1.442695
    %v88 = vpow.pop %v87
    %v89 = vmul.f32 %v85, 1.442695
    %v90 = vpow.pop %v89
    %v91 = vmul.f32 %v86, 1.442695
    %v92 = vpow.pop %v91
    %v93 = vsel %vm74, %v88, 0.0
    %v94 = vsel %vm75, %v90, 0.0
    %v95 = vsel %vm76, %v92, 0.0
    %vm96 = vcmask 850944
    %v97 = vsel %vm96, %v44, -inf
    %v98 = vmax.f32 %v42, %v43
    %v99 = vmax.f32 %v98, %v97
    %100 = vmax.xlane.f32.xlu0 %v99
    %v101 = vpop.xlane.xlu0 %100
    %v102 = vsub.f32 %v42, %v101
    %v103 = vsub.f32 %v43, %v101
    %v104 = vsub.f32 %v44, %v101
    %v105 = vmul.f32 %v102, 1.442695
    %v106 = vpow.pop %v105
    %v107 = vmul.f32 %v103, 1.442695
    %v108 = vpow.pop %v107
    %v109 = vmul.f32 %v104, 1.442695
    %v110 = vpow.pop %v109
    %v111 = vadd.f32 %v106, %v108
    %v112 = vsel %vm96, %v110, 0.0
    %v113 = vadd.f32 %v111, %v112
    %114 = vadd.xlane.f32.xlu0 %v113
    %v115 = vpop.xlane.xlu0 %114
    %v116 = vlog2.pop %v115
    %v117 = vmul.f32 %v116, 0.6931472
    %v118 = vadd.f32 %v101, %v117
    %v119 = vmul.f32 %v93, %v42
    %v120 = vmul.f32 %v94, %v43
    %v121 = vmul.f32 %v95, %v44
    %v122 = vadd.f32 %v119, %v120
    %v123 = vsel %vm96, %v121, 0.0
    %v124 = vadd.f32 %v122, %v123
    %125 = vadd.xlane.f32.xlu0 %v124
    %v126 = vpop.xlane.xlu0 %125
    %v127 = vmul.f32 %v118, 12.968225
    %v128 = vsub.f32 %v127, %v126
    %s129 = smul.u32 0, 8
    %v130 = vlaneseq
    %v131 = vshrl.u32 %v130, 7
    %v132 = vstv %s129
    %v133 = vadd.s32 %v132, %v131
    %vm134 = vcmp.lt.s32.totalorder %v133, 8
    %v135 = vsel %vm134, %v128, 0.0
    %s136 = sld [smem:[#allocation2]]
    %vm137 = vcmask 7168
    %v138 = vsel %vm137, %v135, 0.0
    %139 = vadd.xlane.f32.xlu0 %v138
    %v140 = vpop.xlane.xlu0 %139
    %v141 = vrot.slane %v140, 4
    %v142 = vadd.f32 %v140, %v141
    %v143 = vrot.slane %v142, 2
    %v144 = vadd.f32 %v142, %v143
    %v145 = vrot.slane %v144, 1
    %v146 = vadd.f32 %v144, %v145
    %s147 = vtos %v146
    %s148 = sadd.f32 %s136, %s147
    %s149 = scalar_lea.smem [#allocation2], 0
    %150 = sst [smem:[%s149]] %s148
    // Predicated region
    $region22: #{tpu_custom_call.1} parent=1 // pred_check
      %p151 = pneg %p36
    $region23: #{tpu_custom_call.1} parent=1 // pred_check_branch
      %153 = sbr.rel (%p151) target = $region25
    $region24: #{tpu_custom_call.1} parent=1 // pred_region
      %s154 = sld [smem:[#allocation2]]
      %v155 = vrcp.pop 8.0
      %s156 = vtos %v155
      %s157 = smul.f32 %s154, %s156
      %s158 = scalar_lea.smem [#allocation8], 0
      %159 = sst [smem:[%s158]] %s157
    $region25: #{tpu_custom_call.1} parent=1 // pred_fallthru
      _
    // Predicated region
    $region26: #{tpu_custom_call.1} parent=1 // pred_check
      _
    $region27: #{tpu_custom_call.1} parent=1 // pred_check_branch
      %161 = sbr.rel (0) target = $region29
    $region28: #{tpu_custom_call.1} parent=1 // pred_region
      %s163 = ssub.s32 16, 16
      %164 = vsyncadd [#allocation5], %s163
      %167 = dma.smem_to_hbm [#allocation8], 16, %s2, [#allocation5]
    $region29: #{tpu_custom_call.1} parent=1 // pred_fallthru
      _
    // Predicated region
    $region30: #{tpu_custom_call.1} parent=1 // pred_check
      _
    $region31: #{tpu_custom_call.1} parent=1 // pred_check_branch
      %169 = sbr.rel (0) target = $region33
    $region32: #{tpu_custom_call.1} parent=1 // pred_region
      %170 = dma.done [#allocation5], 16
    $region33: #{tpu_custom_call.1} parent=1 // pred_fallthru
      _
    %171 = sfence
    %172 = vsyncpa [#allocation4], 1
    %173 = vsyncpa [#allocation7], 1
    %174 = vsyncpa [#allocation5], 1

</llo_original>
